<compile_context>
chip_gen: v7x
topology: tpu7x:2x2x1
jax: 0.10.0
libtpu: 0.0.40
codegen_flags: <defaults>
</compile_context>

<pallas_src>
import functools

import jax
import jax.numpy as jnp
from jax.experimental import pallas as pl
from jax.experimental.pallas import tpu as pltpu


# ----------------------------------------------------------------------------
# Pallas kernel: assemble one (1, c_blk, W+2p, L+2p) padded block
# ----------------------------------------------------------------------------
def _mobius_pad_kernel(x_ref, lpad_ref, rpad_ref, o_ref, *, p, W, L, c_blk, dtype):
    Lp = L + 2 * p
    zband = jnp.zeros((c_blk, p, Lp), dtype)
    # Top / bottom zero bands (these cover all four corner regions too).
    o_ref[0, :, 0:p, :] = zband
    o_ref[0, :, p + W:p + W + p, :] = zband
    # Interior copy.
    o_ref[0, :, p:p + W, p:p + L] = x_ref[0]
    # Mobius wrap columns (already W-flipped by the wrapper).
    o_ref[0, :, p:p + W, 0:p] = lpad_ref[0]
    o_ref[0, :, p:p + W, p + L:p + L + p] = rpad_ref[0]


def _pick_channel_tile(C, per_channel_bytes, budget_bytes=2 * 1024 * 1024):
    """Largest divisor of C whose block stays under the VMEM budget (>= 1)."""
    best = 1
    for d in range(1, C + 1):
        if C % d == 0 and d * per_channel_bytes <= budget_bytes:
            best = d
    return best


# ----------------------------------------------------------------------------
# Wrapper
# ----------------------------------------------------------------------------
def mobius_pad_naive(x, kernel_size):
    assert kernel_size % 2 == 1, "kernel_size must be odd"
    p = kernel_size // 2
    N, C, W, L = x.shape
    if p == 0:
        return x
    assert p <= L, "padding width must not exceed L"

    # Tiny W-flipped boundary slabs (only wrapper-side compute; ~p/L of x).
    lpad = jnp.flip(x[:, :, :, L - p:], axis=2)   # (N, C, W, p)
    rpad = jnp.flip(x[:, :, :, :p], axis=2)       # (N, C, W, p)

    Wp, Lp = W + 2 * p, L + 2 * p
    itemsize = jnp.dtype(x.dtype).itemsize
    per_channel_bytes = (W * L + 2 * W * p + Wp * Lp) * itemsize
    c_blk = _pick_channel_tile(C, per_channel_bytes)

    kernel = functools.partial(
        _mobius_pad_kernel, p=p, W=W, L=L, c_blk=c_blk, dtype=x.dtype)

    x_spec = pl.BlockSpec((1, c_blk, W, L), lambda n, c: (n, c, 0, 0))
    pad_spec = pl.BlockSpec((1, c_blk, W, p), lambda n, c: (n, c, 0, 0))
    o_spec = pl.BlockSpec((1, c_blk, Wp, Lp), lambda n, c: (n, c, 0, 0))

    return pl.pallas_call(
        kernel,
        out_shape=jax.ShapeDtypeStruct((N, C, Wp, Lp), x.dtype),
        grid=(N, C // c_blk),
        in_specs=[x_spec, pad_spec, pad_spec],
        out_specs=o_spec,
        compiler_params=pltpu.CompilerParams(
            dimension_semantics=("parallel", "parallel"),
            vmem_limit_bytes=32 * 1024 * 1024,
        ),
    )(x, lpad, rpad)


# ----------------------------------------------------------------------------
# Pure-JAX reference (mirrors the torch forward exactly) for validation
# ----------------------------------------------------------------------------
def mobius_pad_naive_reference(x, kernel_size):
    p = kernel_size // 2
    N, C, W, L = x.shape
    out = jnp.zeros((N, C, W + 2 * p, L + 2 * p), x.dtype)
    if p == 0:
        return x
    out = out.at[:, :, p:p + W, p:p + L].set(x)
    out = out.at[:, :, p:p + W, :p].set(jnp.flip(x[:, :, :, L - p:], axis=2))
    out = out.at[:, :, p:p + W, p + L:].set(jnp.flip(x[:, :, :, :p], axis=2))
    return out


if __name__ == "__main__":
    key = jax.random.PRNGKey(0)
    k1, k2 = jax.random.split(key)

    # kernel_size = 3  -> pad width p = 1
    x = jax.random.normal(k1, (2, 4, 16, 16), dtype=jnp.float32)
    out = jax.block_until_ready(mobius_pad_naive(x, kernel_size=3))
    ref = mobius_pad_naive_reference(x, kernel_size=3)
    assert out.shape == (2, 4, 18, 18), out.shape
    assert jnp.array_equal(out, ref), "mismatch vs reference (kernel_size=3)"

    # kernel_size = 5  -> pad width p = 2 (exercises multi-column wrap)
    x2 = jax.random.normal(k2, (2, 4, 16, 16), dtype=jnp.float32)
    out2 = jax.block_until_ready(mobius_pad_naive(x2, kernel_size=5))
    ref2 = mobius_pad_naive_reference(x2, kernel_size=5)
    assert out2.shape == (2, 4, 20, 20), out2.shape
    assert jnp.array_equal(out2, ref2), "mismatch vs reference (kernel_size=5)"

    print("KERNEL_OK")
</pallas_src>

<mosaic_0001>
module attributes {stable_mosaic.version = 11 : i64} {
  func.func @_mobius_pad_kernel(%arg0: i32, %arg1: i32, %arg2: memref<1x4x16x16xf32, #tpu.memory_space<vmem>>, %arg3: memref<1x4x16x1xf32, #tpu.memory_space<vmem>>, %arg4: memref<1x4x16x1xf32, #tpu.memory_space<vmem>>, %arg5: memref<1x4x18x18xf32, #tpu.memory_space<vmem>>) attributes {dimension_semantics = [#tpu.dimension_semantics<parallel>, #tpu.dimension_semantics<parallel>], iteration_bounds = array<i64: 2, 1>, scalar_prefetch = 0 : i64, scratch_operands = 0 : i64, tpu.core_type = #tpu.core_type<tc>, window_params = [{transform_indices = @transform_0, window_bounds = array<i64: 1, 4, 16, 16>}, {transform_indices = @transform_1, window_bounds = array<i64: 1, 4, 16, 1>}, {transform_indices = @transform_2, window_bounds = array<i64: 1, 4, 16, 1>}, {transform_indices = @transform_3, window_bounds = array<i64: 1, 4, 18, 18>}]} {
    %cst = arith.constant 0.000000e+00 : f32
    %0 = vector.broadcast %cst : f32 to vector<4x1x18xf32>
    %c0 = arith.constant 0 : index
    %c0_0 = arith.constant 0 : index
    %c0_1 = arith.constant 0 : index
    %c0_2 = arith.constant 0 : index
    %1 = vector.load %arg5[%c0, %c0_0, %c0_1, %c0_2] : memref<1x4x18x18xf32, #tpu.memory_space<vmem>>, vector<1x4x1x18xf32>
    %2 = vector.shape_cast %1 : vector<1x4x1x18xf32> to vector<4x1x18xf32>
    %3 = vector.shape_cast %0 : vector<4x1x18xf32> to vector<1x4x1x18xf32>
    tpu.vector_store %arg5[%c0, %c0_0, %c0_1, %c0_2], %3 {strides = array<i32>} : memref<1x4x18x18xf32, #tpu.memory_space<vmem>>, vector<1x4x1x18xf32>,
    %c0_3 = arith.constant 0 : index
    %c0_4 = arith.constant 0 : index
    %c17 = arith.constant 17 : index
    %c0_5 = arith.constant 0 : index
    %4 = vector.load %arg5[%c0_3, %c0_4, %c17, %c0_5] : memref<1x4x18x18xf32, #tpu.memory_space<vmem>>, vector<1x4x1x18xf32>
    %5 = vector.shape_cast %4 : vector<1x4x1x18xf32> to vector<4x1x18xf32>
    %6 = vector.shape_cast %0 : vector<4x1x18xf32> to vector<1x4x1x18xf32>
    tpu.vector_store %arg5[%c0_3, %c0_4, %c17, %c0_5], %6 {strides = array<i32>} : memref<1x4x18x18xf32, #tpu.memory_space<vmem>>, vector<1x4x1x18xf32>,
    %c0_6 = arith.constant 0 : index
    %c0_7 = arith.constant 0 : index
    %c0_8 = arith.constant 0 : index
    %c0_9 = arith.constant 0 : index
    %7 = vector.load %arg2[%c0_6, %c0_7, %c0_8, %c0_9] : memref<1x4x16x16xf32, #tpu.memory_space<vmem>>, vector<1x4x16x16xf32>
    %8 = vector.shape_cast %7 : vector<1x4x16x16xf32> to vector<4x16x16xf32>
    %c0_10 = arith.constant 0 : index
    %c0_11 = arith.constant 0 : index
    %c1 = arith.constant 1 : index
    %c1_12 = arith.constant 1 : index
    %9 = vector.load %arg5[%c0_10, %c0_11, %c1, %c1_12] : memref<1x4x18x18xf32, #tpu.memory_space<vmem>>, vector<1x4x16x16xf32>
    %10 = vector.shape_cast %9 : vector<1x4x16x16xf32> to vector<4x16x16xf32>
    %11 = vector.shape_cast %8 : vector<4x16x16xf32> to vector<1x4x16x16xf32>
    tpu.vector_store %arg5[%c0_10, %c0_11, %c1, %c1_12], %11 {strides = array<i32>} : memref<1x4x18x18xf32, #tpu.memory_space<vmem>>, vector<1x4x16x16xf32>,
    %c0_13 = arith.constant 0 : index
    %c0_14 = arith.constant 0 : index
    %c0_15 = arith.constant 0 : index
    %c0_16 = arith.constant 0 : index
    %12 = vector.load %arg3[%c0_13, %c0_14, %c0_15, %c0_16] : memref<1x4x16x1xf32, #tpu.memory_space<vmem>>, vector<1x4x16x1xf32>
    %13 = vector.shape_cast %12 : vector<1x4x16x1xf32> to vector<4x16x1xf32>
    %c0_17 = arith.constant 0 : index
    %c0_18 = arith.constant 0 : index
    %c1_19 = arith.constant 1 : index
    %c0_20 = arith.constant 0 : index
    %14 = vector.load %arg5[%c0_17, %c0_18, %c1_19, %c0_20] : memref<1x4x18x18xf32, #tpu.memory_space<vmem>>, vector<1x4x16x1xf32>
    %15 = vector.shape_cast %14 : vector<1x4x16x1xf32> to vector<4x16x1xf32>
    %16 = vector.shape_cast %13 : vector<4x16x1xf32> to vector<1x4x16x1xf32>
    tpu.vector_store %arg5[%c0_17, %c0_18, %c1_19, %c0_20], %16 {strides = array<i32>} : memref<1x4x18x18xf32, #tpu.memory_space<vmem>>, vector<1x4x16x1xf32>,
    %c0_21 = arith.constant 0 : index
    %c0_22 = arith.constant 0 : index
    %c0_23 = arith.constant 0 : index
    %c0_24 = arith.constant 0 : index
    %17 = vector.load %arg4[%c0_21, %c0_22, %c0_23, %c0_24] : memref<1x4x16x1xf32, #tpu.memory_space<vmem>>, vector<1x4x16x1xf32>
    %18 = vector.shape_cast %17 : vector<1x4x16x1xf32> to vector<4x16x1xf32>
    %c0_25 = arith.constant 0 : index
    %c0_26 = arith.constant 0 : index
    %c1_27 = arith.constant 1 : index
    %c17_28 = arith.constant 17 : index
    %19 = vector.load %arg5[%c0_25, %c0_26, %c1_27, %c17_28] : memref<1x4x18x18xf32, #tpu.memory_space<vmem>>, vector<1x4x16x1xf32>
    %20 = vector.shape_cast %19 : vector<1x4x16x1xf32> to vector<4x16x1xf32>
    %21 = vector.shape_cast %18 : vector<4x16x1xf32> to vector<1x4x16x1xf32>
    tpu.vector_store %arg5[%c0_25, %c0_26, %c1_27, %c17_28], %21 {strides = array<i32>} : memref<1x4x18x18xf32, #tpu.memory_space<vmem>>, vector<1x4x16x1xf32>,
    return
  }
  func.func @transform_0(%arg0: i32, %arg1: i32) -> (i32, i32, i32, i32) {
    %c0_i32 = arith.constant 0 : i32
    %c0_i32_0 = arith.constant 0 : i32
    %c0_i32_1 = arith.constant 0 : i32
    return %arg0, %arg1, %c0_i32, %c0_i32_0 : i32, i32, i32, i32
  }
  func.func @transform_1(%arg0: i32, %arg1: i32) -> (i32, i32, i32, i32) {
    %c0_i32 = arith.constant 0 : i32
    %c0_i32_0 = arith.constant 0 : i32
    %c0_i32_1 = arith.constant 0 : i32
    return %arg0, %arg1, %c0_i32, %c0_i32_0 : i32, i32, i32, i32
  }
  func.func @transform_2(%arg0: i32, %arg1: i32) -> (i32, i32, i32, i32) {
    %c0_i32 = arith.constant 0 : i32
    %c0_i32_0 = arith.constant 0 : i32
    %c0_i32_1 = arith.constant 0 : i32
    return %arg0, %arg1, %c0_i32, %c0_i32_0 : i32, i32, i32, i32
  }
  func.func @transform_3(%arg0: i32, %arg1: i32) -> (i32, i32, i32, i32) {
    %c0_i32 = arith.constant 0 : i32
    %c0_i32_0 = arith.constant 0 : i32
    %c0_i32_1 = arith.constant 0 : i32
    return %arg0, %arg1, %c0_i32, %c0_i32_0 : i32, i32, i32, i32
  }
}

</mosaic_0001>

<llo_original>
// kernel: tpu_custom_call.1
$region0: #{tpu_custom_call.1}
  #allocation0 [shape = 'u32[]', space=smem, size = 0x4, offset = 0x4, fixed_abs, tag = 'smem constant byte address 0x4 - core index']
  #allocation1 [shape = 'u32[144,128]{1,0:T(1,128)}', space=vmem, size = 0x12000, scoped, tag = 'internal scratch']
  %s0 = inlined_call_operand.vmem [shape: f32[2,4,16,16], index: 0, kind: input, shape index: {}]
  %s1 = inlined_call_operand.vmem [shape: f32[2,4,16,1], index: 1, kind: input, shape index: {}]
  %s2 = inlined_call_operand.vmem [shape: f32[2,4,16,1], index: 2, kind: input, shape index: {}]
  %s3 = inlined_call_operand.vmem [shape: f32[2,4,18,18], index: 3, kind: output, shape index: {}]
  %s4 = sld [smem:[#allocation0]]
  $region45: #{tpu_custom_call.1} parent=0
    _
  %s6 = ssub.s32 1, %s4
  %s7 = scalar_select 0, %s6, %s4
  loop: start=0, step=1, limit=4
  $region2: #{tpu_custom_call.1} parent=0 // loop_pre_header
    _
  $region3: #{tpu_custom_call.1} parent=0 // loop_header
    %s9 = sphi 0, %s13
    %p10 = scmp.ge.s32.totalorder %s9, 4
    %s16 = sphi 0, %s28
    %s17 = sphi 0, %s24
    %s18 = sphi 0, %s16
    %s19 = sphi 0, %s17
    %s20 = sphi 0, %s18
    %s21 = sphi 0, %s19
    %s33 = sphi 0, %s35
    %s36 = sphi 0, %s33
    %s37 = sphi 0, %s36
    %s53 = sphi 0, %s37
    %s61 = sphi 0, %s63
    %s64 = sphi 0, %s61
    %s65 = sphi 0, %s64
    %s81 = sphi 0, %s65
    %s89 = sphi 0, %s91
    %s92 = sphi 0, %s89
    %s93 = sphi 0, %s92
    %s109 = sphi 0, %s93
    %s117 = sphi 0, %s119
    %s120 = sphi 0, %s117
    %s121 = sphi 0, %s120
    %s137 = sphi 0, %s121
  $region4: #{tpu_custom_call.1} parent=0 // loop_header_branch
    %12 = sbr.rel (%p10) target = $region8
  $region5: #{tpu_custom_call.1} parent=0 // loop_body
    %s14 = ssub.s32 %s9, 1
    %s15 = ssub.s32 %s9, 2
    %s22 = sadd.s32 1, %s17
    %p23 = scmp.ge.s32.totalorder %s22, 1
    %s24 = scalar_select %p23, 0, %s22
    %s25 = sadd.s32 1, %s16
    %s26 = scalar_select %p23, %s25, %s16
    %p27 = scmp.ge.s32.totalorder %s26, 2
    %s28 = scalar_select %p27, 0, %s26
    %s29 = ssub.s32 %s16, %s28
    %s30 = ssub.s32 %s17, %s24
    %s31 = sor.u32 %s29, %s30
    %p32 = scmp.eq.s32.totalorder %s31, 0
    %s34 = sadd.s32 %s33, 1
    %s35 = scalar_select %p32, %s33, %s34
    %p38 = pneg %p32
    %p39 = scmp.eq.s32.totalorder %s9, 1
    %p40 = por %p38, %p39
    %p41 = scmp.ne.s32.totalorder %s33, %s36
    %p42 = scmp.eq.s32.totalorder %s9, 0
    %p43 = por %p41, %p42
    %p44 = scmp.ne.s32.totalorder %s33, %s36
    %p45 = scmp.eq.s32.totalorder %s14, 1
    %p46 = por %p44, %p45
    %p47 = scmp.ne.s32.totalorder %s36, %s37
    %p48 = scmp.eq.s32.totalorder %s14, 0
    %p49 = por %p47, %p48
    %p50 = scmp.ne.s32.totalorder %s36, %s37
    %p51 = scmp.eq.s32.totalorder %s15, 1
    %p52 = por %p50, %p51
    %p54 = scmp.ne.s32.totalorder %s37, %s53
    %p55 = scmp.eq.s32.totalorder %s15, 0
    %p56 = por %p54, %p55
    %s57 = ssub.s32 %s16, %s28
    %s58 = ssub.s32 %s17, %s24
    %s59 = sor.u32 %s57, %s58
    %p60 = scmp.eq.s32.totalorder %s59, 0
    %s62 = sadd.s32 %s61, 1
    %s63 = scalar_select %p60, %s61, %s62
    %p66 = pneg %p60
    %p67 = scmp.eq.s32.totalorder %s9, 1
    %p68 = por %p66, %p67
    %p69 = scmp.ne.s32.totalorder %s61, %s64
    %p70 = scmp.eq.s32.totalorder %s9, 0
    %p71 = por %p69, %p70
    %p72 = scmp.ne.s32.totalorder %s61, %s64
    %p73 = scmp.eq.s32.totalorder %s14, 1
    %p74 = por %p72, %p73
    %p75 = scmp.ne.s32.totalorder %s64, %s65
    %p76 = scmp.eq.s32.totalorder %s14, 0
    %p77 = por %p75, %p76
    %p78 = scmp.ne.s32.totalorder %s64, %s65
    %p79 = scmp.eq.s32.totalorder %s15, 1
    %p80 = por %p78, %p79
    %p82 = scmp.ne.s32.totalorder %s65, %s81
    %p83 = scmp.eq.s32.totalorder %s15, 0
    %p84 = por %p82, %p83
    %s85 = ssub.s32 %s16, %s28
    %s86 = ssub.s32 %s17, %s24
    %s87 = sor.u32 %s85, %s86
    %p88 = scmp.eq.s32.totalorder %s87, 0
    %s90 = sadd.s32 %s89, 1
    %s91 = scalar_select %p88, %s89, %s90
    %p94 = pneg %p88
    %p95 = scmp.eq.s32.totalorder %s9, 1
    %p96 = por %p94, %p95
    %p97 = scmp.ne.s32.totalorder %s89, %s92
    %p98 = scmp.eq.s32.totalorder %s9, 0
    %p99 = por %p97, %p98
    %p100 = scmp.ne.s32.totalorder %s89, %s92
    %p101 = scmp.eq.s32.totalorder %s14, 1
    %p102 = por %p100, %p101
    %p103 = scmp.ne.s32.totalorder %s92, %s93
    %p104 = scmp.eq.s32.totalorder %s14, 0
    %p105 = por %p103, %p104
    %p106 = scmp.ne.s32.totalorder %s92, %s93
    %p107 = scmp.eq.s32.totalorder %s15, 1
    %p108 = por %p106, %p107
    %p110 = scmp.ne.s32.totalorder %s93, %s109
    %p111 = scmp.eq.s32.totalorder %s15, 0
    %p112 = por %p110, %p111
    %s113 = ssub.s32 %s16, %s28
    %s114 = ssub.s32 %s17, %s24
    %s115 = sor.u32 %s113, %s114
    %p116 = scmp.eq.s32.totalorder %s115, 0
    %s118 = sadd.s32 %s117, 1
    %s119 = scalar_select %p116, %s117, %s118
    %p122 = pneg %p116
    %p123 = scmp.eq.s32.totalorder %s9, 1
    %p124 = por %p122, %p123
    %p125 = scmp.ne.s32.totalorder %s117, %s120
    %p126 = scmp.eq.s32.totalorder %s9, 0
    %p127 = por %p125, %p126
    %p128 = scmp.ne.s32.totalorder %s117, %s120
    %p129 = scmp.eq.s32.totalorder %s14, 1
    %p130 = por %p128, %p129
    %p131 = scmp.ne.s32.totalorder %s120, %s121
    %p132 = scmp.eq.s32.totalorder %s14, 0
    %p133 = por %p131, %p132
    %p134 = scmp.ne.s32.totalorder %s120, %s121
    %p135 = scmp.eq.s32.totalorder %s15, 1
    %p136 = por %p134, %p135
    %p138 = scmp.ne.s32.totalorder %s121, %s137
    %p139 = scmp.eq.s32.totalorder %s15, 0
    %p140 = por %p138, %p139
    %p141 = scmp.le.s32.totalorder 1, %s9
    %p142 = scmp.lt.s32.totalorder %s9, 3
    %p143 = pnand %p141, %p142
    %p144 = pneg %p143
    // Predicated region
    $region9: #{tpu_custom_call.1} parent=5 // pred_check
      _
    $region10: #{tpu_custom_call.1} parent=5 // pred_check_branch
      %146 = sbr.rel (%p143) target = $region12
    $region11: #{tpu_custom_call.1} parent=5 // pred_region
      %s147 = ssub.s32 %s9, 1
    $region12: #{tpu_custom_call.1} parent=5 // pred_fallthru
      _
    %p148 = scmp.lt.s32.totalorder %s9, 2
    // Predicated region
    $region13: #{tpu_custom_call.1} parent=5 // pred_check
      %p149 = pneg %p148
    $region14: #{tpu_custom_call.1} parent=5 // pred_check_branch
      %151 = sbr.rel (%p149) target = $region16
    $region15: #{tpu_custom_call.1} parent=5 // pred_region
      // Predicated region
      $region17: #{tpu_custom_call.1} parent=15 // pred_check
        %p152 = pneg %p43
      $region18: #{tpu_custom_call.1} parent=15 // pred_check_branch
        %154 = sbr.rel (%p152) target = $region20
      $region19: #{tpu_custom_call.1} parent=15 // pred_region
        %s155 = smul.u32 4, %s17
        %p156 = scmp.lt.s32.totalorder %s16, 1
        %s157 = scalar_select %p156, %s16, 1
        %p158 = scmp.lt.s32.totalorder %s155, 3
        %s159 = scalar_select %p158, %s155, 3
        %s160 = smul.addr %s159, 2
        %s161 = smul.addr %s157, 8
        %s162 = sadd.s32 %s160, %s161
        %s163 = smul.addr %s162, 8
        %s164 = scalar_lea.vmem %s0, %s163
        %s165 = smul.u32 4, %s17
      $region20: #{tpu_custom_call.1} parent=15 // pred_fallthru
        _
      // Predicated region
      $region21: #{tpu_custom_call.1} parent=15 // pred_check
        %p166 = pneg %p71
      $region22: #{tpu_custom_call.1} parent=15 // pred_check_branch
        %168 = sbr.rel (%p166) target = $region24
      $region23: #{tpu_custom_call.1} parent=15 // pred_region
        %s169 = smul.u32 4, %s17
        %p170 = scmp.lt.s32.totalorder %s16, 1
        %s171 = scalar_select %p170, %s16, 1
        %p172 = scmp.lt.s32.totalorder %s169, 3
        %s173 = scalar_select %p172, %s169, 3
        %s174 = smul.addr %s173, 2
        %s175 = smul.addr %s171, 8
        %s176 = sadd.s32 %s174, %s175
        %s177 = smul.addr %s176, 8
        %s178 = scalar_lea.vmem %s1, %s177
        %s179 = smul.u32 4, %s17
      $region24: #{tpu_custom_call.1} parent=15 // pred_fallthru
        _
      // Predicated region
      $region25: #{tpu_custom_call.1} parent=15 // pred_check
        %p180 = pneg %p99
      $region26: #{tpu_custom_call.1} parent=15 // pred_check_branch
        %182 = sbr.rel (%p180) target = $region28
      $region27: #{tpu_custom_call.1} parent=15 // pred_region
        %s183 = smul.u32 4, %s17
        %p184 = scmp.lt.s32.totalorder %s16, 1
        %s185 = scalar_select %p184, %s16, 1
        %p186 = scmp.lt.s32.totalorder %s183, 3
        %s187 = scalar_select %p186, %s183, 3
        %s188 = smul.addr %s187, 2
        %s189 = smul.addr %s185, 8
        %s190 = sadd.s32 %s188, %s189
        %s191 = smul.addr %s190, 8
        %s192 = scalar_lea.vmem %s2, %s191
        %s193 = smul.u32 4, %s17
      $region28: #{tpu_custom_call.1} parent=15 // pred_fallthru
        _
    $region16: #{tpu_custom_call.1} parent=5 // pred_fallthru
      _
    %p194 = scmp.le.s32.totalorder 1, %s9
    %p195 = scmp.lt.s32.totalorder %s9, 3
    %p196 = pnand %p194, %p195
    %p197 = pneg %p196
    // Predicated region
    $region29: #{tpu_custom_call.1} parent=5 // pred_check
      _
    $region30: #{tpu_custom_call.1} parent=5 // pred_check_branch
      %199 = sbr.rel (%p196) target = $region32
    $region31: #{tpu_custom_call.1} parent=5 // pred_region
      %s200 = ssub.s32 %s9, 1
      %s201 = smul.u32 4, %s19
      %p202 = scmp.lt.s32.totalorder %s18, 1
      %s203 = scalar_select %p202, %s18, 1
      %p204 = scmp.lt.s32.totalorder %s201, 3
      %s205 = scalar_select %p204, %s201, 3
      %s206 = smul.addr %s205, 2
      %s207 = smul.addr %s203, 8
      %s208 = sadd.s32 %s206, %s207
      %s209 = smul.addr %s208, 8
      %s210 = scalar_lea.vmem %s0, %s209
      %p211 = pneg %p49
      %p212 = pneg %p46
      %s213 = smul.u32 4, %s19
      %p214 = scmp.lt.s32.totalorder %s18, 1
      %s215 = scalar_select %p214, %s18, 1
      %p216 = scmp.lt.s32.totalorder %s213, 3
      %s217 = scalar_select %p216, %s213, 3
      %s218 = smul.addr %s217, 2
      %s219 = smul.addr %s215, 8
      %s220 = sadd.s32 %s218, %s219
      %s221 = smul.addr %s220, 8
      %s222 = scalar_lea.vmem %s1, %s221
      %p223 = pneg %p77
      %p224 = pneg %p74
      %s225 = smul.u32 4, %s19
      %p226 = scmp.lt.s32.totalorder %s18, 1
      %s227 = scalar_select %p226, %s18, 1
      %p228 = scmp.lt.s32.totalorder %s225, 3
      %s229 = scalar_select %p228, %s225, 3
      %s230 = smul.addr %s229, 2
      %s231 = smul.addr %s227, 8
      %s232 = sadd.s32 %s230, %s231
      %s233 = smul.addr %s232, 8
      %s234 = scalar_lea.vmem %s2, %s233
      %p235 = pneg %p105
      %p236 = pneg %p102
      %p237 = pneg %p133
      %p238 = pneg %p130
      %s239 = smul.u32 4, %s19
      %p240 = scmp.lt.s32.totalorder %s18, 1
      %s241 = scalar_select %p240, %s18, 1
      %p242 = scmp.lt.s32.totalorder %s239, 3
      %s243 = scalar_select %p242, %s239, 3
      %s244 = smul.addr %s243, 3
      %s245 = smul.addr %s241, 12
      %s246 = sadd.s32 %s244, %s245
      %s247 = smul.addr %s246, 8
      %s248 = scalar_lea.vmem %s3, %s247
      %s249 = smul.u32 4, %s19
      %p250 = scmp.lt.s32.totalorder %s18, 1
      %s251 = scalar_select %p250, %s18, 1
      %p252 = scmp.lt.s32.totalorder %s249, 3
      %s253 = scalar_select %p252, %s249, 3
      %s254 = smul.addr %s253, 2
      %s255 = smul.addr %s251, 8
      %s256 = sadd.s32 %s254, %s255
      %s257 = smul.addr %s256, 8
      %s258 = scalar_lea.vmem %s0, %s257
      %s259 = smul.u32 4, %s19
      %s260 = smul.u32 4, %s19
      %p261 = scmp.lt.s32.totalorder %s18, 1
      %s262 = scalar_select %p261, %s18, 1
      %p263 = scmp.lt.s32.totalorder %s260, 3
      %s264 = scalar_select %p263, %s260, 3
      %s265 = smul.addr %s264, 2
      %s266 = smul.addr %s262, 8
      %s267 = sadd.s32 %s265, %s266
      %s268 = smul.addr %s267, 8
      %s269 = scalar_lea.vmem %s1, %s268
      %s270 = smul.u32 4, %s19
      %s271 = smul.u32 4, %s19
      %p272 = scmp.lt.s32.totalorder %s18, 1
      %s273 = scalar_select %p272, %s18, 1
      %p274 = scmp.lt.s32.totalorder %s271, 3
      %s275 = scalar_select %p274, %s271, 3
      %s276 = smul.addr %s275, 2
      %s277 = smul.addr %s273, 8
      %s278 = sadd.s32 %s276, %s277
      %s279 = smul.addr %s278, 8
      %s280 = scalar_lea.vmem %s2, %s279
      %s281 = smul.u32 4, %s19
      %s282 = smul.u32 4, %s19
      %p283 = scmp.lt.s32.totalorder %s18, 1
      %s284 = scalar_select %p283, %s18, 1
      %p285 = scmp.lt.s32.totalorder %s282, 3
      %s286 = scalar_select %p285, %s282, 3
      %s287 = smul.addr %s286, 3
      %s288 = smul.addr %s284, 12
      %s289 = sadd.s32 %s287, %s288
      %s290 = smul.addr %s289, 8
      %s291 = scalar_lea.vmem %s3, %s290
      %s292 = smul.u32 4, %s19
      %vm293 = vcmask 139264
      %294 = vst.msk [vmem:[%s291] sm:$0x1] %vm293, 0.0
      %295 = vst.msk [vmem:[%s291 + $0x18] sm:$0x1] %vm293, 0.0
      %296 = vst.msk [vmem:[%s291 + $0x30] sm:$0x1] %vm293, 0.0
      %297 = vst.msk [vmem:[%s291 + $0x48] sm:$0x1] %vm293, 0.0
      %298 = vst.msk [vmem:[%s291 + $0x11] sm:$0x1] %vm293, 0.0
      %299 = vst.msk [vmem:[%s291 + $0x29] sm:$0x1] %vm293, 0.0
      %300 = vst.msk [vmem:[%s291 + $0x41] sm:$0x1] %vm293, 0.0
      %301 = vst.msk [vmem:[%s291 + $0x59] sm:$0x1] %vm293, 0.0
      %v302 = vld [vmem:[%s258] sm:$0xff]
      %v303 = vld [vmem:[%s258 + $0x8] sm:$0xff]
      %v304 = vld [vmem:[%s258 + $0x10] sm:$0xff]
      %v305 = vld [vmem:[%s258 + $0x18] sm:$0xff]
      %v306 = vld [vmem:[%s258 + $0x20] sm:$0xff]
      %v307 = vld [vmem:[%s258 + $0x28] sm:$0xff]
      %v308 = vld [vmem:[%s258 + $0x30] sm:$0xff]
      %v309 = vld [vmem:[%s258 + $0x38] sm:$0xff]
      %318 = vrot.lane.b32.xlu0 %v302, 1
      %v319 = vpop.permute.xlu0 %318
      %320 = vrot.lane.b32.xlu0 %v303, 1
      %v321 = vpop.permute.xlu0 %320
      %322 = vrot.lane.b32.xlu0 %v304, 1
      %v323 = vpop.permute.xlu0 %322
      %324 = vrot.lane.b32.xlu0 %v305, 1
      %v325 = vpop.permute.xlu0 %324
      %326 = vrot.lane.b32.xlu0 %v306, 1
      %v327 = vpop.permute.xlu0 %326
      %328 = vrot.lane.b32.xlu0 %v307, 1
      %v329 = vpop.permute.xlu0 %328
      %330 = vrot.lane.b32.xlu0 %v308, 1
      %v331 = vpop.permute.xlu0 %330
      %332 = vrot.lane.b32.xlu0 %v309, 1
      %v333 = vpop.permute.xlu0 %332
      %vm342 = vcmask 138248
      %343 = vst.msk [vmem:[%s291 + $0x1] sm:$0xff] %vm342, %v319
      %344 = vst.msk [vmem:[%s291 + $0x9] sm:$0xff] %vm342, %v321
      %345 = vst.msk [vmem:[%s291 + $0x19] sm:$0xff] %vm342, %v323
      %346 = vst.msk [vmem:[%s291 + $0x21] sm:$0xff] %vm342, %v325
      %347 = vst.msk [vmem:[%s291 + $0x31] sm:$0xff] %vm342, %v327
      %348 = vst.msk [vmem:[%s291 + $0x39] sm:$0xff] %vm342, %v329
      %349 = vst.msk [vmem:[%s291 + $0x49] sm:$0xff] %vm342, %v331
      %350 = vst.msk [vmem:[%s291 + $0x51] sm:$0xff] %vm342, %v333
      %v351 = vld [vmem:[%s269] sm:$0xff]
      %v352 = vld [vmem:[%s269 + $0x8] sm:$0xff]
      %v353 = vld [vmem:[%s269 + $0x10] sm:$0xff]
      %v354 = vld [vmem:[%s269 + $0x18] sm:$0xff]
      %v355 = vld [vmem:[%s269 + $0x20] sm:$0xff]
      %v356 = vld [vmem:[%s269 + $0x28] sm:$0xff]
      %v357 = vld [vmem:[%s269 + $0x30] sm:$0xff]
      %v358 = vld [vmem:[%s269 + $0x38] sm:$0xff]
      %vm359 = vcmask 7168
      %360 = vst.msk [vmem:[%s291 + $0x1] sm:$0xff] %vm359, %v351
      %361 = vst.msk [vmem:[%s291 + $0x9] sm:$0xff] %vm359, %v352
      %362 = vst.msk [vmem:[%s291 + $0x19] sm:$0xff] %vm359, %v353
      %363 = vst.msk [vmem:[%s291 + $0x21] sm:$0xff] %vm359, %v354
      %364 = vst.msk [vmem:[%s291 + $0x31] sm:$0xff] %vm359, %v355
      %365 = vst.msk [vmem:[%s291 + $0x39] sm:$0xff] %vm359, %v356
      %366 = vst.msk [vmem:[%s291 + $0x49] sm:$0xff] %vm359, %v357
      %367 = vst.msk [vmem:[%s291 + $0x51] sm:$0xff] %vm359, %v358
      %v368 = vld [vmem:[%s280] sm:$0xff]
      %v369 = vld [vmem:[%s280 + $0x8] sm:$0xff]
      %v370 = vld [vmem:[%s280 + $0x10] sm:$0xff]
      %v371 = vld [vmem:[%s280 + $0x18] sm:$0xff]
      %v372 = vld [vmem:[%s280 + $0x20] sm:$0xff]
      %v373 = vld [vmem:[%s280 + $0x28] sm:$0xff]
      %v374 = vld [vmem:[%s280 + $0x30] sm:$0xff]
      %v375 = vld [vmem:[%s280 + $0x38] sm:$0xff]
      %384 = vrot.lane.b32.xlu0 %v368, 17
      %v385 = vpop.permute.xlu0 %384
      %386 = vrot.lane.b32.xlu0 %v369, 17
      %v387 = vpop.permute.xlu0 %386
      %388 = vrot.lane.b32.xlu0 %v370, 17
      %v389 = vpop.permute.xlu0 %388
      %390 = vrot.lane.b32.xlu0 %v371, 17
      %v391 = vpop.permute.xlu0 %390
      %392 = vrot.lane.b32.xlu0 %v372, 17
      %v393 = vpop.permute.xlu0 %392
      %394 = vrot.lane.b32.xlu0 %v373, 17
      %v395 = vpop.permute.xlu0 %394
      %396 = vrot.lane.b32.xlu0 %v374, 17
      %v397 = vpop.permute.xlu0 %396
      %398 = vrot.lane.b32.xlu0 %v375, 17
      %v399 = vpop.permute.xlu0 %398
      %vm408 = vcmask 146568
      %409 = vst.msk [vmem:[%s291 + $0x1] sm:$0xff] %vm408, %v385
      %410 = vst.msk [vmem:[%s291 + $0x9] sm:$0xff] %vm408, %v387
      %411 = vst.msk [vmem:[%s291 + $0x19] sm:$0xff] %vm408, %v389
      %412 = vst.msk [vmem:[%s291 + $0x21] sm:$0xff] %vm408, %v391
      %413 = vst.msk [vmem:[%s291 + $0x31] sm:$0xff] %vm408, %v393
      %414 = vst.msk [vmem:[%s291 + $0x39] sm:$0xff] %vm408, %v395
      %415 = vst.msk [vmem:[%s291 + $0x49] sm:$0xff] %vm408, %v397
      %416 = vst.msk [vmem:[%s291 + $0x51] sm:$0xff] %vm408, %v399
      %s417 = smul.u32 4, %s19
      %p418 = scmp.lt.s32.totalorder %s18, 1
      %s419 = scalar_select %p418, %s18, 1
      %p420 = scmp.lt.s32.totalorder %s417, 3
      %s421 = scalar_select %p420, %s417, 3
      %s422 = smul.addr %s421, 3
      %s423 = smul.addr %s419, 12
      %s424 = sadd.s32 %s422, %s423
      %s425 = smul.addr %s424, 8
      %s426 = scalar_lea.vmem %s3, %s425
      // Predicated region
      $region33: #{tpu_custom_call.1} parent=31 // pred_check
        %p427 = pneg %p130
      $region34: #{tpu_custom_call.1} parent=31 // pred_check_branch
        %429 = sbr.rel (%p427) target = $region36
      $region35: #{tpu_custom_call.1} parent=31 // pred_region
        %s430 = smul.u32 4, %s19
      $region36: #{tpu_custom_call.1} parent=31 // pred_fallthru
        _
    $region32: #{tpu_custom_call.1} parent=5 // pred_fallthru
      _
    %p431 = scmp.le.s32.totalorder 2, %s9
    // Predicated region
    $region37: #{tpu_custom_call.1} parent=5 // pred_check
      %p432 = pneg %p431
    $region38: #{tpu_custom_call.1} parent=5 // pred_check_branch
      %434 = sbr.rel (%p432) target = $region40
    $region39: #{tpu_custom_call.1} parent=5 // pred_region
      %s435 = ssub.s32 %s9, 2
      // Predicated region
      $region41: #{tpu_custom_call.1} parent=39 // pred_check
        %p436 = pneg %p136
      $region42: #{tpu_custom_call.1} parent=39 // pred_check_branch
        %438 = sbr.rel (%p436) target = $region44
      $region43: #{tpu_custom_call.1} parent=39 // pred_region
        %s439 = smul.u32 4, %s21
        %p440 = scmp.lt.s32.totalorder %s20, 1
        %s441 = scalar_select %p440, %s20, 1
        %p442 = scmp.lt.s32.totalorder %s439, 3
        %s443 = scalar_select %p442, %s439, 3
        %s444 = smul.addr %s443, 3
        %s445 = smul.addr %s441, 12
        %s446 = sadd.s32 %s444, %s445
        %s447 = smul.addr %s446, 8
        %s448 = scalar_lea.vmem %s3, %s447
      $region44: #{tpu_custom_call.1} parent=39 // pred_fallthru
        _
    $region40: #{tpu_custom_call.1} parent=5 // pred_fallthru
      _
  $region6: #{tpu_custom_call.1} parent=0 // loop_footer
    %s13 = sadd.s32 1, %s9
  $region7: #{tpu_custom_call.1} parent=0 // loop_footer_branch
    %8 = sbr.rel target = $region3
  $region8: #{tpu_custom_call.1} parent=0 // loop_exit
    _

</llo_original>
